<compile_context>
chip_gen: v6e
topology: v6e:2x2x1
jax: 0.10.0
libtpu: 0.0.40
codegen_flags: <defaults>
</compile_context>

<pallas_src>
import functools
from math import log

import jax
import jax.numpy as jnp
from jax.experimental import pallas as pl
from jax.experimental.pallas import tpu as pltpu


def _ceil_to(x: int, m: int) -> int:
    return ((x + m - 1) // m) * m


# ----------------------------------------------------------------------------- kernels ------
def _gamma_encoding_kernel_t(noise_ref, freq_ref, w_ref, ba_ref, out_ref):
    """Transposed layout (dim < 128): channels on sublanes, batch on lanes.

    noise_ref: (1, TB)       batch tile on the lane axis
    freq_ref : (count, 1)    hoisted frequency column
    w_ref    : (dim, dim)    torch Linear weight (out, in); input axis ordered [sin | cos]
    ba_ref   : (dim, 2)      col 0 = bias, col 1 = PReLU alpha
    out_ref  : (dim, TB)     transposed output tile
    """
    enc = freq_ref[...] * noise_ref[...]                       # (count, TB), lane-dense
    # Sublane-stacked [sin; cos]: concat along axis 0 is free vreg packing (count % 8 == 0),
    # giving one full-K matmul instead of two half-K matmuls + a VPU add.
    act = jnp.concatenate([jnp.sin(enc), jnp.cos(enc)], axis=0).astype(w_ref.dtype)  # (dim, TB)
    y = jnp.dot(w_ref[...], act, preferred_element_type=jnp.float32)                 # (dim, TB)
    y = y + ba_ref[:, 0:1]                                     # bias column, broadcast over lanes
    alpha = ba_ref[:, 1:2]
    out_ref[...] = jnp.where(y >= 0, y, alpha * y).astype(out_ref.dtype)


def _gamma_encoding_kernel_n(noise_ref, freq_ref, wt_ref, ba_ref, out_ref, *, count):
    """Natural layout (dim >= 128): batch on sublanes, channels on lanes (no epilogue transpose).

    noise_ref: (TB, 1)
    freq_ref : (1, count)
    wt_ref   : (dim, dim)    W^T (in, out); rows [0:count] = sin columns, [count:] = cos columns
    ba_ref   : (2, dim)      row 0 = bias, row 1 = PReLU alpha
    out_ref  : (TB, dim)
    """
    dim = wt_ref.shape[0]
    enc = noise_ref[...] * freq_ref[...]                       # (TB, count)
    s = jnp.sin(enc).astype(wt_ref.dtype)
    c = jnp.cos(enc).astype(wt_ref.dtype)
    # Two K=count matmuls on static sublane slices of the resident W^T (avoids a lane concat).
    y = (jnp.dot(s, wt_ref[0:count, :], preferred_element_type=jnp.float32)
         + jnp.dot(c, wt_ref[count:dim, :], preferred_element_type=jnp.float32)
         + ba_ref[0:1, :])                                     # (TB, dim)
    alpha = ba_ref[1:2, :]
    out_ref[...] = jnp.where(y >= 0, y, alpha * y).astype(out_ref.dtype)


# ----------------------------------------------------------------------------- wrapper ------
def gamma_encoding(noise_level, weight, bias, prelu_alpha, *,
                   out_dtype=jnp.float32, mxu_dtype=jnp.bfloat16):
    """noise_level: (B,); weight: (dim, dim) torch.nn.Linear layout (out, in); bias: (dim,);
    prelu_alpha: (dim,).  Returns (B, dim, 1, 1) in out_dtype (pass bf16 to halve store traffic
    on v5e if the consumer tolerates it)."""
    dim = int(weight.shape[0])
    assert weight.shape == (dim, dim) and dim % 2 == 0, "GammaEncoding needs even square dim"
    count = dim // 2
    B = int(noise_level.shape[0])
    f32 = jnp.float32

    # --- batch tiling ------------------------------------------------------------------------
    LANE = 128
    B128 = _ceil_to(max(B, 1), LANE)
    if B128 <= LANE:
        TB = LANE                                   # minimum lane-dense tile; grid=(1,)
    else:
        # Split into >=2 grid steps (both v7x TCs + DMA/compute overlap) but keep tiles in the
        # 128..512 range so per-step overhead (~0.35us) stays small on single-TC v5e.
        TB = min(512, max(LANE, (B128 // 2) // LANE * LANE))
    # v7x VMEM guard: TB <= 512 keeps double-buffered (dim, TB) f32 tiles + the resident bf16
    # weight well under the 32 MiB default scoped VMEM even for dim ~ 2048.
    B_pad = _ceil_to(max(B, 1), TB)
    grid = (B_pad // TB,)

    # --- hoisted constants (trace time) -------------------------------------------------------
    freq = jnp.exp(f32(log(10000.0)) * (jnp.arange(count, dtype=f32) / f32(count)))
    w = jnp.asarray(weight, f32)
    b = jnp.asarray(bias, f32)
    a = jnp.asarray(prelu_alpha, f32)

    cost = pl.CostEstimate(
        flops=2 * B_pad * dim * dim,
        transcendentals=B_pad * dim,
        bytes_accessed=4 * B_pad * (1 + dim) + 2 * dim * dim + 4 * (count + 2 * dim),
    )
    cparams = pltpu.CompilerParams(dimension_semantics=("parallel",))

    if dim < 128:
        # Transposed layout: channels on sublanes, batch on lanes (lane-dense for small dim).
        noise_row = jnp.zeros((1, B_pad), f32).at[0, :B].set(noise_level.astype(f32))
        freq_col = freq.reshape(count, 1)
        w_in = w.astype(mxu_dtype)                         # (out, in); in-axis = [sin | cos]
        ba = jnp.stack([b, a], axis=1)                     # (dim, 2)
        out_t = pl.pallas_call(
            _gamma_encoding_kernel_t,
            out_shape=jax.ShapeDtypeStruct((dim, B_pad), out_dtype),
            grid=grid,
            in_specs=[
                pl.BlockSpec((1, TB), lambda i: (0, i)),       # noise  (streamed)
                pl.BlockSpec((count, 1), lambda i: (0, 0)),    # freq   (resident)
                pl.BlockSpec((dim, dim), lambda i: (0, 0)),    # weight (resident)
                pl.BlockSpec((dim, 2), lambda i: (0, 0)),      # bias|alpha (resident)
            ],
            out_specs=pl.BlockSpec((dim, TB), lambda i: (0, i)),
            compiler_params=cparams,
            cost_estimate=cost,
        )(noise_row, freq_col, w_in, ba)
        out = out_t[:, :B].T                                   # small layout plumbing (dim < 128)
    else:
        # Natural layout: batch on sublanes, channels on lanes; no epilogue transpose.
        noise_col = jnp.zeros((B_pad, 1), f32).at[:B, 0].set(noise_level.astype(f32))
        freq_row = freq.reshape(1, count)
        wt = w.T.astype(mxu_dtype)                         # (in, out)
        ba = jnp.stack([b, a], axis=0)                     # (2, dim)
        out_n = pl.pallas_call(
            functools.partial(_gamma_encoding_kernel_n, count=count),
            out_shape=jax.ShapeDtypeStruct((B_pad, dim), out_dtype),
            grid=grid,
            in_specs=[
                pl.BlockSpec((TB, 1), lambda i: (i, 0)),       # noise  (streamed)
                pl.BlockSpec((1, count), lambda i: (0, 0)),    # freq   (resident)
                pl.BlockSpec((dim, dim), lambda i: (0, 0)),    # W^T    (resident)
                pl.BlockSpec((2, dim), lambda i: (0, 0)),      # bias|alpha (resident)
            ],
            out_specs=pl.BlockSpec((TB, dim), lambda i: (i, 0)),
            compiler_params=cparams,
            cost_estimate=cost,
        )(noise_col, freq_row, wt, ba)
        out = out_n[:B]

    return out.reshape(B, dim, 1, 1)


# ----------------------------------------------------------------------------- reference ----
def gamma_encoding_ref(noise_level, weight, bias, prelu_alpha):
    """Pure-JAX (f32) reference mirroring the PyTorch forward."""
    dim = weight.shape[0]
    count = dim // 2
    step = jnp.arange(count, dtype=noise_level.dtype) / count
    enc = noise_level[:, None] * jnp.exp(log(10000.0) * step[None, :])
    feats = jnp.concatenate([jnp.sin(enc), jnp.cos(enc)], axis=-1)
    y = feats @ weight.T + bias
    y = jnp.where(y >= 0, y, prelu_alpha[None, :] * y)
    return y.reshape(-1, dim, 1, 1)


if __name__ == "__main__":
    key = jax.random.PRNGKey(0)

    def _make(dim, B, k):
        k_noise, k_w, k_b = jax.random.split(k, 3)
        noise = jax.random.uniform(k_noise, (B,), dtype=jnp.float32)
        bound = 1.0 / (dim ** 0.5)
        w = jax.random.uniform(k_w, (dim, dim), jnp.float32, -bound, bound)
        b = jax.random.uniform(k_b, (dim,), jnp.float32, -bound, bound)
        a = jnp.full((dim,), 0.25, jnp.float32)          # PyTorch PReLU default
        return noise, w, b, a

    k1, k2 = jax.random.split(key)

    # Small-dim path (transposed / lane-dense layout), e.g. dim=32, batch=8.
    noise, w, b, a = _make(32, 8, k1)
    out = jax.block_until_ready(gamma_encoding(noise, w, b, a))
    ref = gamma_encoding_ref(noise, w, b, a)
    assert out.shape == (8, 32, 1, 1)
    # bf16 MXU operands -> tolerance relaxed from 1e-5 to 5e-2 (per review's correctness note).
    assert jnp.allclose(out, ref, atol=5e-2, rtol=5e-2), float(jnp.max(jnp.abs(out - ref)))

    # dim >= 128 path (natural layout, no epilogue transpose), e.g. dim=128, batch=4.
    noise, w, b, a = _make(128, 4, k2)
    out = jax.block_until_ready(gamma_encoding(noise, w, b, a))
    ref = gamma_encoding_ref(noise, w, b, a)
    assert out.shape == (4, 128, 1, 1)
    assert jnp.allclose(out, ref, atol=5e-2, rtol=5e-2), float(jnp.max(jnp.abs(out - ref)))

    print("KERNEL_OK")
</pallas_src>

<mosaic_0001>
module attributes {stable_mosaic.version = 11 : i64} {
  func.func @_gamma_encoding_kernel_t(%arg0: i32, %arg1: memref<1x128xf32, #tpu.memory_space<vmem>>, %arg2: memref<16x1xf32, #tpu.memory_space<vmem>>, %arg3: memref<32x32xbf16, #tpu.memory_space<vmem>>, %arg4: memref<32x2xf32, #tpu.memory_space<vmem>>, %arg5: memref<32x128xf32, #tpu.memory_space<vmem>>) attributes {dimension_semantics = [#tpu.dimension_semantics<parallel>], iteration_bounds = array<i64: 1>, scalar_prefetch = 0 : i64, scratch_operands = 0 : i64, tpu.core_type = #tpu.core_type<tc>, window_params = [{transform_indices = @transform_0, window_bounds = array<i64: 1, 128>}, {pipeline_mode = #tpu.pipeline_mode<synchronous>, transform_indices = @transform_1, window_bounds = array<i64: 16, 1>}, {pipeline_mode = #tpu.pipeline_mode<synchronous>, transform_indices = @transform_2, window_bounds = array<i64: 32, 32>}, {pipeline_mode = #tpu.pipeline_mode<synchronous>, transform_indices = @transform_3, window_bounds = array<i64: 32, 2>}, {transform_indices = @transform_4, window_bounds = array<i64: 32, 128>}]} {
    %c0 = arith.constant 0 : index
    %c0_0 = arith.constant 0 : index
    %0 = vector.load %arg2[%c0, %c0_0] : memref<16x1xf32, #tpu.memory_space<vmem>>, vector<16x1xf32>
    %c0_1 = arith.constant 0 : index
    %c0_2 = arith.constant 0 : index
    %1 = vector.load %arg1[%c0_1, %c0_2] : memref<1x128xf32, #tpu.memory_space<vmem>>, vector<1x128xf32>
    %2 = vector.broadcast %0 : vector<16x1xf32> to vector<16x128xf32>
    %3 = vector.broadcast %1 : vector<1x128xf32> to vector<16x128xf32>
    %4 = arith.mulf %2, %3 : vector<16x128xf32>
    %5 = math.sin %4 : vector<16x128xf32>
    %6 = math.cos %4 : vector<16x128xf32>
    %7 = tpu.concatenate %5, %6 in 0 : vector<16x128xf32>, vector<16x128xf32> -> vector<32x128xf32>
    %8 = arith.truncf %7 : vector<32x128xf32> to vector<32x128xbf16>
    %c0_3 = arith.constant 0 : index
    %c0_4 = arith.constant 0 : index
    %9 = vector.load %arg3[%c0_3, %c0_4] : memref<32x32xbf16, #tpu.memory_space<vmem>>, vector<32x32xbf16>
    %cst = arith.constant dense<0.000000e+00> : vector<32x128xf32>
    %10 = tpu.matmul %9, %8, %cst {dimension_numbers = #tpu.dot_dimension_numbers<[1], [0], [0], [1], [0, 0, 1, 1], [], []>} : vector<32x32xbf16>, vector<32x128xbf16>, vector<32x128xf32> -> vector<32x128xf32>
    %c0_5 = arith.constant 0 : index
    %c0_6 = arith.constant 0 : index
    %11 = vector.load %arg4[%c0_5, %c0_6] : memref<32x2xf32, #tpu.memory_space<vmem>>, vector<32x1xf32>
    %12 = vector.broadcast %11 : vector<32x1xf32> to vector<32x128xf32>
    %13 = arith.addf %10, %12 : vector<32x128xf32>
    %c0_7 = arith.constant 0 : index
    %c1 = arith.constant 1 : index
    %14 = vector.load %arg4[%c0_7, %c1] : memref<32x2xf32, #tpu.memory_space<vmem>>, vector<32x1xf32>
    %cst_8 = arith.constant 0.000000e+00 : f32
    %15 = vector.broadcast %cst_8 : f32 to vector<32x128xf32>
    %16 = arith.cmpf oge, %13, %15 : vector<32x128xf32>
    %17 = vector.broadcast %14 : vector<32x1xf32> to vector<32x128xf32>
    %18 = arith.mulf %17, %13 : vector<32x128xf32>
    %19 = arith.select %16, %13, %18 : vector<32x128xi1>, vector<32x128xf32>
    %c0_9 = arith.constant 0 : index
    %c0_10 = arith.constant 0 : index
    %20 = vector.load %arg5[%c0_9, %c0_10] : memref<32x128xf32, #tpu.memory_space<vmem>>, vector<32x128xf32>
    tpu.vector_store %arg5[%c0_9, %c0_10], %19 {strides = array<i32>} : memref<32x128xf32, #tpu.memory_space<vmem>>, vector<32x128xf32>,
    return
  }
  func.func @transform_0(%arg0: i32) -> (i32, i32) {
    %c0_i32 = arith.constant 0 : i32
    %c0_i32_0 = arith.constant 0 : i32
    return %c0_i32, %arg0 : i32, i32
  }
  func.func @transform_1(%arg0: i32) -> (i32, i32) {
    %c0_i32 = arith.constant 0 : i32
    %c0_i32_0 = arith.constant 0 : i32
    %c0_i32_1 = arith.constant 0 : i32
    return %c0_i32, %c0_i32_0 : i32, i32
  }
  func.func @transform_2(%arg0: i32) -> (i32, i32) {
    %c0_i32 = arith.constant 0 : i32
    %c0_i32_0 = arith.constant 0 : i32
    %c0_i32_1 = arith.constant 0 : i32
    return %c0_i32, %c0_i32_0 : i32, i32
  }
  func.func @transform_3(%arg0: i32) -> (i32, i32) {
    %c0_i32 = arith.constant 0 : i32
    %c0_i32_0 = arith.constant 0 : i32
    %c0_i32_1 = arith.constant 0 : i32
    return %c0_i32, %c0_i32_0 : i32, i32
  }
  func.func @transform_4(%arg0: i32) -> (i32, i32) {
    %c0_i32 = arith.constant 0 : i32
    %c0_i32_0 = arith.constant 0 : i32
    return %c0_i32, %arg0 : i32, i32
  }
}

</mosaic_0001>

<llo_original>
// kernel: tpu_custom_call.1
$region0: #{tpu_custom_call.1}
  #allocation0 [shape = 'u32[]', space=smem, size = 0x4, offset = 0x4, fixed_abs, tag = 'smem constant byte address 0x4 - core index']
  #allocation1 [shape = 'u32[144,128]{1,0:T(1,128)}', space=vmem, size = 0x12000, scoped, tag = 'internal scratch']
  %s0 = inlined_call_operand.vmem [shape: f32[1,128], index: 0, kind: input, shape index: {}]
  %s1 = inlined_call_operand.vmem [shape: f32[16,1], index: 1, kind: input, shape index: {}]
  %s2 = inlined_call_operand.vmem [shape: bf16[32,32], index: 2, kind: input, shape index: {}]
  %s3 = inlined_call_operand.vmem [shape: f32[32,2], index: 3, kind: input, shape index: {}]
  %s4 = inlined_call_operand.hbm [shape: f32[32,128], index: 4, kind: output, shape index: {}]
  %s5 = sld [smem:[#allocation0]]
  $region26: #{tpu_custom_call.1} parent=0
    _
  %s7 = ssub.s32 1, %s5
  %s8 = scalar_select 0, %s7, %s5
  $region1: #{tpu_custom_call.1} parent=0
    #allocation2 [shape = 'u8[16384]{0}', space=vmem, size = 0x4000, scoped, tag = 'output window, operand 0, single buffered']
    #allocation3 [shape = 's32[1]{0}', space=sflag, size = 0x4, scoped, tag = 'scoped memory for tpu_custom_call.1']
    %9 = vsyncpa [#allocation3], 0
    // Predicated region
    $region2: #{tpu_custom_call.1} parent=1 // pred_check
      _
    $region3: #{tpu_custom_call.1} parent=1 // pred_check_branch
      %11 = sbr.rel (0) target = $region5
    $region4: #{tpu_custom_call.1} parent=1 // pred_region
      _
    $region5: #{tpu_custom_call.1} parent=1 // pred_fallthru
      _
    // Predicated region
    $region6: #{tpu_custom_call.1} parent=1 // pred_check
      _
    $region7: #{tpu_custom_call.1} parent=1 // pred_check_branch
      %13 = sbr.rel (0) target = $region9
    $region8: #{tpu_custom_call.1} parent=1 // pred_region
      _
    $region9: #{tpu_custom_call.1} parent=1 // pred_fallthru
      _
    // Predicated region
    $region10: #{tpu_custom_call.1} parent=1 // pred_check
      _
    $region11: #{tpu_custom_call.1} parent=1 // pred_check_branch
      %15 = sbr.rel (0) target = $region13
    $region12: #{tpu_custom_call.1} parent=1 // pred_region
      _
    $region13: #{tpu_custom_call.1} parent=1 // pred_fallthru
      _
    // Predicated region
    $region14: #{tpu_custom_call.1} parent=1 // pred_check
      _
    $region15: #{tpu_custom_call.1} parent=1 // pred_check_branch
      %17 = sbr.rel (0) target = $region17
    $region16: #{tpu_custom_call.1} parent=1 // pred_region
      _
    $region17: #{tpu_custom_call.1} parent=1 // pred_fallthru
      _
    %v19 = vld [vmem:[%s1] sm:$0xff]
    %v20 = vld [vmem:[%s1 + $0x8] sm:$0xff]
    %v21 = vld [vmem:[%s0] sm:$0x1]
    %23 = vset.pattern.permute.xlu0 0
    %24 = vperm.xlu0 %23, %v19
    %v25 = vpop.permute.xlu0 %24
    %28 = vset.pattern.permute.xlu0 0
    %29 = vperm.xlu0 %28, %v20
    %v30 = vpop.permute.xlu0 %29
    %v33 = vlaneseq
    %v34 = vshrl.u32 %v33, 7
    %v35 = vsub.s32 0, %v34
    %v36 = vrot.slane %v21, %v35
    %v38 = vmul.f32 %v25, %v36
    %v39 = vmul.f32 %v30, %v36
    %v40 = vand.u32 2147483647, %v38
    %vm41 = vcmp.le.f32.partialorder %v40, 0.7853982
    %vm42 = vcmp.lt.s32.totalorder %v38, 0
    %v43 = vand.u32 %v38, 2139095040
    %v44 = vshrl.u32 %v43, 23
    %v45 = vsub.s32 %v44, 127
    %v46 = vand.u32 2147483647, %v38
    %v47 = vand.u32 %v46, 8388607
    %v48 = vor.u32 %v47, 8388608
    %v49 = vsub.s32 0, %v48
    %v50 = vadd.s32 %v45, 1
    %vm51 = vcmp.gt.s32.totalorder %v50, 0
    %v52 = vsel %vm51, %v50, 0
    %v53 = vshrl.u32 %v52, 5
    %v54 = vand.u32 %v52, 31
    %v55 = vsub.s32 32, %v54
    %v56 = vshrl.u32 683565275, %v55
    %v57 = vshll.u32 683565275, %v54
    %v58 = vshrl.u32 2475754826, %v55
    %v59 = vor.u32 %v57, %v58
    %v60 = vshll.u32 2475754826, %v54
    %v61 = vshrl.u32 2131351028, %v55
    %v62 = vor.u32 %v60, %v61
    %v63 = vshll.u32 2131351028, %v54
    %v64 = vshrl.u32 2102212464, %v55
    %v65 = vor.u32 %v63, %v64
    %v66 = vshll.u32 2102212464, %v54
    %v67 = vshrl.u32 920167782, %v55
    %v68 = vor.u32 %v66, %v67
    %v69 = vshll.u32 920167782, %v54
    %v70 = vshrl.u32 1326507024, %v55
    %v71 = vor.u32 %v69, %v70
    %vm72 = vcmp.lt.s32.totalorder %v53, 1
    %vm73 = vcmp.lt.s32.totalorder %v53, 2
    %vm74 = vcmp.lt.s32.totalorder %v53, 3
    %vm75 = vcmp.lt.s32.totalorder %v53, 4
    %v76 = vsel %vm72, %v56, %v59
    %v77 = vsel %vm75, %v65, 2102212464
    %v78 = vsel %vm74, %v62, %v77
    %v79 = vsel %vm73, %v76, %v78
    %v80 = vsel %vm72, %v59, %v62
    %v81 = vsel %vm75, %v68, 920167782
    %v82 = vsel %vm74, %v65, %v81
    %v83 = vsel %vm73, %v80, %v82
    %v84 = vsel %vm72, %v62, %v65
    %v85 = vsel %vm75, %v71, 1326507024
    %v86 = vsel %vm74, %v68, %v85
    %v87 = vsel %vm73, %v84, %v86
    %v88 = vshll.u32 %v48, 8
    %v89 = vmul.u32.u64.compose %v88, %v87
    %v90 = vextract.low.u32 %v89
    %v91 = vextract.high.u32 %v89
    %v92 = vmul.u32.u64.compose %v88, %v83
    %v93 = vextract.low.u32 %v92
    %v94 = vextract.high.u32 %v92
    %v95 = vmul.u32 %v88, %v79
    %v96 = vadd.s32 %v91, %v93
    %vm97 = vc.u32 %v91, %v93
    %v98 = vadd.s32 %v94, 1
    %v99 = vsel %vm97, %v98, %v94
    %v100 = vadd.s32 %v95, %v99
    %v101 = vadd.s32 %v100, 536870912
    %v102 = vshrl.u32 %v101, 30
    %v103 = vshll.u32 %v102, 30
    %v104 = vsub.s32 %v100, %v103
    %vm105 = vcmp.lt.s32.totalorder %v104, 0
    %v106 = vsub.s32 0, %v104
    %v107 = vsel %vm105, %v106, %v104
    %v108 = vclz %v107
    %v109 = vsub.s32 %v108, 2
    %vm110 = vcmp.gt.s32.totalorder 0, %v109
    %v111 = vsel %vm110, 0, %v109
    %v112 = vsub.s32 32, %v111
    %v113 = vshll.u32 %v104, %v111
    %v114 = vshrl.u32 %v96, %v112
    %v115 = vor.u32 %v113, %v114
    %v116 = vsub.s32 4294967266, %v111
    %v117 = vadd.s32 %v116, 127
    %v118 = vshll.u32 %v117, 23
    %v119 = vor.u32 4788187, %v118
    %v120 = vand.u32 2147483647, %v119
    %v122 = vcvt.s32.f32 %v115
    %v123 = vmul.f32 %v122, %v120
    %v124 = vxor.u32 %v123, 2147483648
    %v125 = vsel %vm42, %v124, %v123
    %v126 = vsub.s32 4, %v102
    %v127 = vsel %vm42, %v126, %v102
    %v128 = vsel %vm41, %v38, %v125
    %v129 = vsel %vm41, 0, %v127
    %v130 = vcosq.f32.pop %v128
    %v131 = vsinq.f32.pop %v128
    %vm132 = vweird.f32 %v38
    %v133 = vadd.s32 %v129, 3
    %v134 = vand.u32 %v133, 3
    %vm135 = vcmp.lt.s32.totalorder %v134, 2
    %vm136 = vcmp.eq.s32.totalorder %v134, 0
    %v137 = vxor.u32 %v131, 2147483648
    %v138 = vsel %vm136, %v130, %v137
    %vm139 = vcmp.eq.s32.totalorder %v134, 2
    %v140 = vxor.u32 %v130, 2147483648
    %v141 = vsel %vm139, %v140, %v131
    %v142 = vsel %vm135, %v138, %v141
    %v143 = vsel %vm132, nan, %v142
    %v144 = vand.u32 2147483647, %v39
    %vm145 = vcmp.le.f32.partialorder %v144, 0.7853982
    %vm146 = vcmp.lt.s32.totalorder %v39, 0
    %v147 = vand.u32 %v39, 2139095040
    %v148 = vshrl.u32 %v147, 23
    %v149 = vsub.s32 %v148, 127
    %v150 = vand.u32 2147483647, %v39
    %v151 = vand.u32 %v150, 8388607
    %v152 = vor.u32 %v151, 8388608
    %v153 = vsub.s32 0, %v152
    %v154 = vadd.s32 %v149, 1
    %vm155 = vcmp.gt.s32.totalorder %v154, 0
    %v156 = vsel %vm155, %v154, 0
    %v157 = vshrl.u32 %v156, 5
    %v158 = vand.u32 %v156, 31
    %v159 = vsub.s32 32, %v158
    %v160 = vshrl.u32 683565275, %v159
    %v161 = vshll.u32 683565275, %v158
    %v162 = vshrl.u32 2475754826, %v159
    %v163 = vor.u32 %v161, %v162
    %v164 = vshll.u32 2475754826, %v158
    %v165 = vshrl.u32 2131351028, %v159
    %v166 = vor.u32 %v164, %v165
    %v167 = vshll.u32 2131351028, %v158
    %v168 = vshrl.u32 2102212464, %v159
    %v169 = vor.u32 %v167, %v168
    %v170 = vshll.u32 2102212464, %v158
    %v171 = vshrl.u32 920167782, %v159
    %v172 = vor.u32 %v170, %v171
    %v173 = vshll.u32 920167782, %v158
    %v174 = vshrl.u32 1326507024, %v159
    %v175 = vor.u32 %v173, %v174
    %vm176 = vcmp.lt.s32.totalorder %v157, 1
    %vm177 = vcmp.lt.s32.totalorder %v157, 2
    %vm178 = vcmp.lt.s32.totalorder %v157, 3
    %vm179 = vcmp.lt.s32.totalorder %v157, 4
    %v180 = vsel %vm176, %v160, %v163
    %v181 = vsel %vm179, %v169, 2102212464
    %v182 = vsel %vm178, %v166, %v181
    %v183 = vsel %vm177, %v180, %v182
    %v184 = vsel %vm176, %v163, %v166
    %v185 = vsel %vm179, %v172, 920167782
    %v186 = vsel %vm178, %v169, %v185
    %v187 = vsel %vm177, %v184, %v186
    %v188 = vsel %vm176, %v166, %v169
    %v189 = vsel %vm179, %v175, 1326507024
    %v190 = vsel %vm178, %v172, %v189
    %v191 = vsel %vm177, %v188, %v190
    %v192 = vshll.u32 %v152, 8
    %v193 = vmul.u32.u64.compose %v192, %v191
    %v194 = vextract.low.u32 %v193
    %v195 = vextract.high.u32 %v193
    %v196 = vmul.u32.u64.compose %v192, %v187
    %v197 = vextract.low.u32 %v196
    %v198 = vextract.high.u32 %v196
    %v199 = vmul.u32 %v192, %v183
    %v200 = vadd.s32 %v195, %v197
    %vm201 = vc.u32 %v195, %v197
    %v202 = vadd.s32 %v198, 1
    %v203 = vsel %vm201, %v202, %v198
    %v204 = vadd.s32 %v199, %v203
    %v205 = vadd.s32 %v204, 536870912
    %v206 = vshrl.u32 %v205, 30
    %v207 = vshll.u32 %v206, 30
    %v208 = vsub.s32 %v204, %v207
    %vm209 = vcmp.lt.s32.totalorder %v208, 0
    %v210 = vsub.s32 0, %v208
    %v211 = vsel %vm209, %v210, %v208
    %v212 = vclz %v211
    %v213 = vsub.s32 %v212, 2
    %vm214 = vcmp.gt.s32.totalorder 0, %v213
    %v215 = vsel %vm214, 0, %v213
    %v216 = vsub.s32 32, %v215
    %v217 = vshll.u32 %v208, %v215
    %v218 = vshrl.u32 %v200, %v216
    %v219 = vor.u32 %v217, %v218
    %v220 = vsub.s32 4294967266, %v215
    %v221 = vadd.s32 %v220, 127
    %v222 = vshll.u32 %v221, 23
    %v223 = vor.u32 4788187, %v222
    %v224 = vand.u32 2147483647, %v223
    %v226 = vcvt.s32.f32 %v219
    %v227 = vmul.f32 %v226, %v224
    %v228 = vxor.u32 %v227, 2147483648
    %v229 = vsel %vm146, %v228, %v227
    %v230 = vsub.s32 4, %v206
    %v231 = vsel %vm146, %v230, %v206
    %v232 = vsel %vm145, %v39, %v229
    %v233 = vsel %vm145, 0, %v231
    %v234 = vcosq.f32.pop %v232
    %v235 = vsinq.f32.pop %v232
    %vm236 = vweird.f32 %v39
    %v237 = vadd.s32 %v233, 3
    %v238 = vand.u32 %v237, 3
    %vm239 = vcmp.lt.s32.totalorder %v238, 2
    %vm240 = vcmp.eq.s32.totalorder %v238, 0
    %v241 = vxor.u32 %v235, 2147483648
    %v242 = vsel %vm240, %v234, %v241
    %vm243 = vcmp.eq.s32.totalorder %v238, 2
    %v244 = vxor.u32 %v234, 2147483648
    %v245 = vsel %vm243, %v244, %v235
    %v246 = vsel %vm239, %v242, %v245
    %v247 = vsel %vm236, nan, %v246
    %v248 = vand.u32 2147483647, %v38
    %vm249 = vcmp.le.f32.partialorder %v248, 0.7853982
    %vm250 = vcmp.lt.s32.totalorder %v38, 0
    %v251 = vand.u32 %v38, 2139095040
    %v252 = vshrl.u32 %v251, 23
    %v253 = vsub.s32 %v252, 127
    %v254 = vand.u32 2147483647, %v38
    %v255 = vand.u32 %v254, 8388607
    %v256 = vor.u32 %v255, 8388608
    %v257 = vsub.s32 0, %v256
    %v258 = vadd.s32 %v253, 1
    %vm259 = vcmp.gt.s32.totalorder %v258, 0
    %v260 = vsel %vm259, %v258, 0
    %v261 = vshrl.u32 %v260, 5
    %v262 = vand.u32 %v260, 31
    %v263 = vsub.s32 32, %v262
    %v264 = vshrl.u32 683565275, %v263
    %v265 = vshll.u32 683565275, %v262
    %v266 = vshrl.u32 2475754826, %v263
    %v267 = vor.u32 %v265, %v266
    %v268 = vshll.u32 2475754826, %v262
    %v269 = vshrl.u32 2131351028, %v263
    %v270 = vor.u32 %v268, %v269
    %v271 = vshll.u32 2131351028, %v262
    %v272 = vshrl.u32 2102212464, %v263
    %v273 = vor.u32 %v271, %v272
    %v274 = vshll.u32 2102212464, %v262
    %v275 = vshrl.u32 920167782, %v263
    %v276 = vor.u32 %v274, %v275
    %v277 = vshll.u32 920167782, %v262
    %v278 = vshrl.u32 1326507024, %v263
    %v279 = vor.u32 %v277, %v278
    %vm280 = vcmp.lt.s32.totalorder %v261, 1
    %vm281 = vcmp.lt.s32.totalorder %v261, 2
    %vm282 = vcmp.lt.s32.totalorder %v261, 3
    %vm283 = vcmp.lt.s32.totalorder %v261, 4
    %v284 = vsel %vm280, %v264, %v267
    %v285 = vsel %vm283, %v273, 2102212464
    %v286 = vsel %vm282, %v270, %v285
    %v287 = vsel %vm281, %v284, %v286
    %v288 = vsel %vm280, %v267, %v270
    %v289 = vsel %vm283, %v276, 920167782
    %v290 = vsel %vm282, %v273, %v289
    %v291 = vsel %vm281, %v288, %v290
    %v292 = vsel %vm280, %v270, %v273
    %v293 = vsel %vm283, %v279, 1326507024
    %v294 = vsel %vm282, %v276, %v293
    %v295 = vsel %vm281, %v292, %v294
    %v296 = vshll.u32 %v256, 8
    %v297 = vmul.u32.u64.compose %v296, %v295
    %v298 = vextract.low.u32 %v297
    %v299 = vextract.high.u32 %v297
    %v300 = vmul.u32.u64.compose %v296, %v291
    %v301 = vextract.low.u32 %v300
    %v302 = vextract.high.u32 %v300
    %v303 = vmul.u32 %v296, %v287
    %v304 = vadd.s32 %v299, %v301
    %vm305 = vc.u32 %v299, %v301
    %v306 = vadd.s32 %v302, 1
    %v307 = vsel %vm305, %v306, %v302
    %v308 = vadd.s32 %v303, %v307
    %v309 = vadd.s32 %v308, 536870912
    %v310 = vshrl.u32 %v309, 30
    %v311 = vshll.u32 %v310, 30
    %v312 = vsub.s32 %v308, %v311
    %vm313 = vcmp.lt.s32.totalorder %v312, 0
    %v314 = vsub.s32 0, %v312
    %v315 = vsel %vm313, %v314, %v312
    %v316 = vclz %v315
    %v317 = vsub.s32 %v316, 2
    %vm318 = vcmp.gt.s32.totalorder 0, %v317
    %v319 = vsel %vm318, 0, %v317
    %v320 = vsub.s32 32, %v319
    %v321 = vshll.u32 %v312, %v319
    %v322 = vshrl.u32 %v304, %v320
    %v323 = vor.u32 %v321, %v322
    %v324 = vsub.s32 4294967266, %v319
    %v325 = vadd.s32 %v324, 127
    %v326 = vshll.u32 %v325, 23
    %v327 = vor.u32 4788187, %v326
    %v328 = vand.u32 2147483647, %v327
    %v330 = vcvt.s32.f32 %v323
    %v331 = vmul.f32 %v330, %v328
    %v332 = vxor.u32 %v331, 2147483648
    %v333 = vsel %vm250, %v332, %v331
    %v334 = vsub.s32 4, %v310
    %v335 = vsel %vm250, %v334, %v310
    %v336 = vsel %vm249, %v38, %v333
    %v337 = vsel %vm249, 0, %v335
    %v338 = vcosq.f32.pop %v336
    %v339 = vsinq.f32.pop %v336
    %vm340 = vweird.f32 %v38
    %v341 = vand.u32 %v337, 3
    %vm342 = vcmp.lt.s32.totalorder %v341, 2
    %vm343 = vcmp.eq.s32.totalorder %v341, 0
    %v344 = vxor.u32 %v339, 2147483648
    %v345 = vsel %vm343, %v338, %v344
    %vm346 = vcmp.eq.s32.totalorder %v341, 2
    %v347 = vxor.u32 %v338, 2147483648
    %v348 = vsel %vm346, %v347, %v339
    %v349 = vsel %vm342, %v345, %v348
    %v350 = vsel %vm340, nan, %v349
    %v351 = vand.u32 2147483647, %v39
    %vm352 = vcmp.le.f32.partialorder %v351, 0.7853982
    %vm353 = vcmp.lt.s32.totalorder %v39, 0
    %v354 = vand.u32 %v39, 2139095040
    %v355 = vshrl.u32 %v354, 23
    %v356 = vsub.s32 %v355, 127
    %v357 = vand.u32 2147483647, %v39
    %v358 = vand.u32 %v357, 8388607
    %v359 = vor.u32 %v358, 8388608
    %v360 = vsub.s32 0, %v359
    %v361 = vadd.s32 %v356, 1
    %vm362 = vcmp.gt.s32.totalorder %v361, 0
    %v363 = vsel %vm362, %v361, 0
    %v364 = vshrl.u32 %v363, 5
    %v365 = vand.u32 %v363, 31
    %v366 = vsub.s32 32, %v365
    %v367 = vshrl.u32 683565275, %v366
    %v368 = vshll.u32 683565275, %v365
    %v369 = vshrl.u32 2475754826, %v366
    %v370 = vor.u32 %v368, %v369
    %v371 = vshll.u32 2475754826, %v365
    %v372 = vshrl.u32 2131351028, %v366
    %v373 = vor.u32 %v371, %v372
    %v374 = vshll.u32 2131351028, %v365
    %v375 = vshrl.u32 2102212464, %v366
    %v376 = vor.u32 %v374, %v375
    %v377 = vshll.u32 2102212464, %v365
    %v378 = vshrl.u32 920167782, %v366
    %v379 = vor.u32 %v377, %v378
    %v380 = vshll.u32 920167782, %v365
    %v381 = vshrl.u32 1326507024, %v366
    %v382 = vor.u32 %v380, %v381
    %vm383 = vcmp.lt.s32.totalorder %v364, 1
    %vm384 = vcmp.lt.s32.totalorder %v364, 2
    %vm385 = vcmp.lt.s32.totalorder %v364, 3
    %vm386 = vcmp.lt.s32.totalorder %v364, 4
    %v387 = vsel %vm383, %v367, %v370
    %v388 = vsel %vm386, %v376, 2102212464
    %v389 = vsel %vm385, %v373, %v388
    %v390 = vsel %vm384, %v387, %v389
    %v391 = vsel %vm383, %v370, %v373
    %v392 = vsel %vm386, %v379, 920167782
    %v393 = vsel %vm385, %v376, %v392
    %v394 = vsel %vm384, %v391, %v393
    %v395 = vsel %vm383, %v373, %v376
    %v396 = vsel %vm386, %v382, 1326507024
    %v397 = vsel %vm385, %v379, %v396
    %v398 = vsel %vm384, %v395, %v397
    %v399 = vshll.u32 %v359, 8
    %v400 = vmul.u32.u64.compose %v399, %v398
    %v401 = vextract.low.u32 %v400
    %v402 = vextract.high.u32 %v400
    %v403 = vmul.u32.u64.compose %v399, %v394
    %v404 = vextract.low.u32 %v403
    %v405 = vextract.high.u32 %v403
    %v406 = vmul.u32 %v399, %v390
    %v407 = vadd.s32 %v402, %v404
    %vm408 = vc.u32 %v402, %v404
    %v409 = vadd.s32 %v405, 1
    %v410 = vsel %vm408, %v409, %v405
    %v411 = vadd.s32 %v406, %v410
    %v412 = vadd.s32 %v411, 536870912
    %v413 = vshrl.u32 %v412, 30
    %v414 = vshll.u32 %v413, 30
    %v415 = vsub.s32 %v411, %v414
    %vm416 = vcmp.lt.s32.totalorder %v415, 0
    %v417 = vsub.s32 0, %v415
    %v418 = vsel %vm416, %v417, %v415
    %v419 = vclz %v418
    %v420 = vsub.s32 %v419, 2
    %vm421 = vcmp.gt.s32.totalorder 0, %v420
    %v422 = vsel %vm421, 0, %v420
    %v423 = vsub.s32 32, %v422
    %v424 = vshll.u32 %v415, %v422
    %v425 = vshrl.u32 %v407, %v423
    %v426 = vor.u32 %v424, %v425
    %v427 = vsub.s32 4294967266, %v422
    %v428 = vadd.s32 %v427, 127
    %v429 = vshll.u32 %v428, 23
    %v430 = vor.u32 4788187, %v429
    %v431 = vand.u32 2147483647, %v430
    %v433 = vcvt.s32.f32 %v426
    %v434 = vmul.f32 %v433, %v431
    %v435 = vxor.u32 %v434, 2147483648
    %v436 = vsel %vm353, %v435, %v434
    %v437 = vsub.s32 4, %v413
    %v438 = vsel %vm353, %v437, %v413
    %v439 = vsel %vm352, %v39, %v436
    %v440 = vsel %vm352, 0, %v438
    %v441 = vcosq.f32.pop %v439
    %v442 = vsinq.f32.pop %v439
    %vm443 = vweird.f32 %v39
    %v444 = vand.u32 %v440, 3
    %vm445 = vcmp.lt.s32.totalorder %v444, 2
    %vm446 = vcmp.eq.s32.totalorder %v444, 0
    %v447 = vxor.u32 %v442, 2147483648
    %v448 = vsel %vm446, %v441, %v447
    %vm449 = vcmp.eq.s32.totalorder %v444, 2
    %v450 = vxor.u32 %v441, 2147483648
    %v451 = vsel %vm449, %v450, %v442
    %v452 = vsel %vm445, %v448, %v451
    %v453 = vsel %vm443, nan, %v452
    %v454 = vpack.c.bf16 %v247, %v143
    %v455 = vpack.c.bf16 %v453, %v350
    %v456 = vld [vmem:[%s2] sm:$0xf]
    %v457 = vld [vmem:[%s2 + $0x4] sm:$0xf]
    %v458 = vld [vmem:[%s2 + $0x8] sm:$0xf]
    %v459 = vld [vmem:[%s2 + $0xc] sm:$0xf]
    %v460 = vld [vmem:[%s3] sm:$0xff]
    %v461 = vld [vmem:[%s3 + $0x8] sm:$0xff]
    %v462 = vld [vmem:[%s3 + $0x10] sm:$0xff]
    %v463 = vld [vmem:[%s3 + $0x18] sm:$0xff]
    %465 = vset.pattern.permute.xlu0 0
    %466 = vperm.xlu0 %465, %v460
    %v467 = vpop.permute.xlu0 %466
    %470 = vset.pattern.permute.xlu0 0
    %471 = vperm.xlu0 %470, %v461
    %v472 = vpop.permute.xlu0 %471
    %475 = vset.pattern.permute.xlu0 0
    %476 = vperm.xlu0 %475, %v462
    %v477 = vpop.permute.xlu0 %476
    %480 = vset.pattern.permute.xlu0 0
    %481 = vperm.xlu0 %480, %v463
    %v482 = vpop.permute.xlu0 %481
    %v488 = vunpack.c.l.b16 %v456
    %v489 = vunpack.c.l.b16 %v457
    %v490 = vunpack.c.l.b16 %v458
    %v491 = vunpack.c.l.b16 %v459
    %v492 = vpack.c.b16 %v489, %v488
    %v493 = vpack.c.b16 %v491, %v490
    %vm494 = vcmask 261120
    %v496 = vsel %vm494, %v492, 0
    %v499 = vsel %vm494, %v493, 0
    %501 = vmatprep.subr.bf16.mxu0 0
    %502 = vmatpush1.bf16.msra.mxu0 0
    %503 = vmatprep.subr.bf16.mxu0 0
    %504 = vmatpush1.bf16.msra.mxu0 0
    %505 = vmatprep.subr.bf16.mxu0 0
    %506 = vmatpush1.bf16.msra.mxu0 0
    %507 = vmatprep.subr.bf16.mxu0 0
    %508 = vmatpush1.bf16.msra.mxu0 0
    %509 = vmatprep.subr.bf16.mxu0 0
    %510 = vmatpush1.bf16.msra.mxu0 0
    %511 = vmatprep.subr.bf16.mxu0 0
    %512 = vmatpush1.bf16.msra.mxu0 0
    %513 = vmatprep.subr.bf16.mxu0 0
    %514 = vmatpush1.bf16.msra.mxu0 %v455
    %515 = vmatprep.subr.bf16.mxu0 0
    %516 = vmatpush1.bf16.msra.mxu0 %v454
    %517 = vmatprep.subr.bf16.mxu0 0
    %518 = vmatpush2.bf16.msra.mxu0 0
    %519 = vmatprep.subr.bf16.mxu0 0
    %520 = vmatpush2.bf16.msra.mxu0 0
    %521 = vmatprep.subr.bf16.mxu0 0
    %522 = vmatpush2.bf16.msra.mxu0 0
    %523 = vmatprep.subr.bf16.mxu0 0
    %524 = vmatpush2.bf16.msra.mxu0 0
    %525 = vmatprep.subr.bf16.mxu0 0
    %526 = vmatpush2.bf16.msra.mxu0 0
    %527 = vmatprep.subr.bf16.mxu0 0
    %528 = vmatpush2.bf16.msra.mxu0 0
    %529 = vmatprep.subr.bf16.mxu0 0
    %530 = vmatpush2.bf16.msra.mxu0 0
    %531 = vmatprep.subr.bf16.mxu0 0
    %532 = vmatpush2.bf16.msra.mxu0 0
    %533 = vmatprep.mubr.bf16.mxu0 0
    %534 = vmatmul.mubr.bf16.gmra.mxu0 %v496
    %v535 = vpop.f32.mrf.mxu0
    %v536 = vadd.f32 %v467, %v535
    %v537 = vpop.f32.mrf.mxu0
    %v538 = vpop.f32.mrf.mxu0
    %v539 = vadd.f32 %v472, %v538
    %v540 = vpop.f32.mrf.mxu0
    %541 = vmatprep.mubr.bf16.mxu0 0
    %542 = vmatmul.mubr.bf16.gmra.mxu0 %v499
    %v543 = vpop.f32.mrf.mxu0
    %v544 = vadd.f32 %v477, %v543
    %v545 = vpop.f32.mrf.mxu0
    %v546 = vpop.f32.mrf.mxu0
    %v547 = vadd.f32 %v482, %v546
    %v548 = vpop.f32.mrf.mxu0
    %549 = vdwg.mxu0
    %vm550 = vcmp.ge.f32.partialorder %v536, 0.0
    %vm551 = vcmp.ge.f32.partialorder %v539, 0.0
    %vm552 = vcmp.ge.f32.partialorder %v544, 0.0
    %vm553 = vcmp.ge.f32.partialorder %v547, 0.0
    %554 = vset.pattern.permute.xlu0 1
    %555 = vperm.xlu0 %554, %v460
    %v556 = vpop.permute.xlu0 %555
    %558 = vset.pattern.permute.xlu0 1
    %559 = vperm.xlu0 %558, %v461
    %v560 = vpop.permute.xlu0 %559
    %562 = vset.pattern.permute.xlu0 1
    %563 = vperm.xlu0 %562, %v462
    %v564 = vpop.permute.xlu0 %563
    %566 = vset.pattern.permute.xlu0 1
    %567 = vperm.xlu0 %566, %v463
    %v568 = vpop.permute.xlu0 %567
    %v570 = vmul.f32 %v556, %v536
    %v571 = vmul.f32 %v560, %v539
    %v572 = vmul.f32 %v564, %v544
    %v573 = vmul.f32 %v568, %v547
    %v574 = vsel %vm550, %v536, %v570
    %v575 = vsel %vm551, %v539, %v571
    %v576 = vsel %vm552, %v544, %v572
    %v577 = vsel %vm553, %v547, %v573
    %578 = vst [vmem:[#allocation2] sm:$0xff] %v574
    %579 = vst [vmem:[#allocation2 + $0x8] sm:$0xff] %v575
    %580 = vst [vmem:[#allocation2 + $0x10] sm:$0xff] %v576
    %581 = vst [vmem:[#allocation2 + $0x18] sm:$0xff] %v577
    // Predicated region
    $region18: #{tpu_custom_call.1} parent=1 // pred_check
      _
    $region19: #{tpu_custom_call.1} parent=1 // pred_check_branch
      %583 = sbr.rel (0) target = $region21
    $region20: #{tpu_custom_call.1} parent=1 // pred_region
      %s585 = ssub.s32 512, 512
      %586 = vsyncadd [#allocation3], %s585
      %s587 = sshll.u32 [#allocation2], 4
      %s588 = int_to_ptr.vmem [resolvable:$true] %s587
      %593 = dma.vmem_to_hbm [thread:$0]  %s588, 512, %s4, [#allocation3], 128, 128, 8
    $region21: #{tpu_custom_call.1} parent=1 // pred_fallthru
      _
    // Predicated region
    $region22: #{tpu_custom_call.1} parent=1 // pred_check
      _
    $region23: #{tpu_custom_call.1} parent=1 // pred_check_branch
      %595 = sbr.rel (0) target = $region25
    $region24: #{tpu_custom_call.1} parent=1 // pred_region
      %596 = dma.done [#allocation3], 512
    $region25: #{tpu_custom_call.1} parent=1 // pred_fallthru
      _
    %597 = vsyncpa [#allocation3], 1

</llo_original>
